<compile_context>
chip_gen: v5e
topology: v5e:2x2
jax: 0.10.0
libtpu: 0.0.40
codegen_flags: <defaults>
</compile_context>

<pallas_src>
import jax
import jax.numpy as jnp
from jax.experimental import pallas as pl
from jax.experimental.pallas import tpu as pltpu

LANE = 128      # vreg lane width
SUBLANE = 8     # f32 sublane count


def _round_up(n, m):
    return ((n + m - 1) // m) * m


def mlp_kernel(x_ref, w1_ref, b1_ref, w2_ref, b2_ref, w3_ref, b3_ref, o_ref):
    # In-kernel f32 -> bf16 cast of the activations (VPU, hidden under DMA / MXU).
    x = x_ref[...].astype(w1_ref.dtype)
    # Layer 1: Linear (bf16 MXU, f32 accumulate) + bias + ReLU in f32.
    h1 = jnp.dot(x, w1_ref[...], preferred_element_type=jnp.float32)
    h1 = jnp.maximum(h1 + b1_ref[...], 0.0)
    # Layer 2.
    h2 = jnp.dot(h1.astype(w2_ref.dtype), w2_ref[...],
                 preferred_element_type=jnp.float32)
    h2 = jnp.maximum(h2 + b2_ref[...], 0.0)
    # Layer 3: Linear + Sigmoid (EUP), real output width only.
    h3 = jnp.dot(h2.astype(w3_ref.dtype), w3_ref[...],
                 preferred_element_type=jnp.float32)
    o_ref[...] = jax.nn.sigmoid(h3 + b3_ref[...]).astype(o_ref.dtype)


def prepare_params(params, matmul_dtype=jnp.bfloat16):
    """Pad HIDDEN dims to 128 lanes (zero-pad, exact since ReLU(0)=0) and cast for the MXU.

    The final layer's output width is left unpadded so the kernel writes only real columns.
    Call once; padded params are reused across forward calls.
    """
    w1, b1, w2, b2, w3, b3 = params
    d_in, h1 = w1.shape
    h2 = w2.shape[1]
    d_out = w3.shape[1]
    h1p, h2p = _round_up(h1, LANE), _round_up(h2, LANE)

    def pad2(a, rows, cols):
        return jnp.pad(a, ((0, rows - a.shape[0]), (0, cols - a.shape[1])))

    w1p = pad2(w1, d_in, h1p).astype(matmul_dtype)
    w2p = pad2(w2, h1p, h2p).astype(matmul_dtype)
    w3p = pad2(w3, h2p, d_out).astype(matmul_dtype)   # rows padded, output cols real
    b1p = pad2(b1, 1, h1p).astype(jnp.float32)
    b2p = pad2(b2, 1, h2p).astype(jnp.float32)
    b3p = b3.astype(jnp.float32)                       # (1, d_out), unpadded
    return (w1p, b1p, w2p, b2p, w3p, b3p), d_out


def _choose_tile_b(B, tile_b_max):
    """Batch tile: big enough to amortize step overhead, split so v7x's 2 TCs both get work."""
    tile_b_max = max(SUBLANE, _round_up(tile_b_max, 16))
    if B >= 2 * tile_b_max:
        return tile_b_max                                  # many steps already
    if B > 2 * SUBLANE:
        # Medium batch: split into (at least) two tiles for the 'parallel' axis on v7x.
        return max(SUBLANE, _round_up(-(-B // 2), SUBLANE))
    return _round_up(max(B, 1), SUBLANE)                   # tiny batch: single exact tile


def downstream_fc_forward(x, padded_params, d_out, *, tile_b=2048):
    """x: [B, D_in] f32. Returns [B, d_out] f32."""
    w1, b1, w2, b2, w3, b3 = padded_params
    B, d_in = x.shape

    tile_b = _choose_tile_b(B, tile_b)
    grid = (pl.cdiv(B, tile_b),)

    def resident(a):
        # Same block every grid step -> weight/bias stays VMEM-resident (no re-DMA).
        return pl.BlockSpec(a.shape, lambda i: (0, 0))

    def nbytes(a):
        return a.size * a.dtype.itemsize

    h1, h2 = w1.shape[1], w2.shape[1]
    cost = pl.CostEstimate(
        flops=2 * B * (d_in * h1 + h1 * h2 + h2 * d_out),
        transcendentals=B * d_out,                       # sigmoid
        bytes_accessed=nbytes(x) + B * d_out * 4
        + sum(nbytes(a) for a in padded_params),
    )

    out = pl.pallas_call(
        mlp_kernel,
        out_shape=jax.ShapeDtypeStruct((B, d_out), jnp.float32),
        grid=grid,
        in_specs=[
            pl.BlockSpec((tile_b, d_in), lambda i: (i, 0)),   # x: f32, streamed over batch
            resident(w1), resident(b1),
            resident(w2), resident(b2),
            resident(w3), resident(b3),
        ],
        # Real-width output block (d_out == full last dim, so sub-128 width is legal).
        out_specs=pl.BlockSpec((tile_b, d_out), lambda i: (i, 0)),
        compiler_params=pltpu.CompilerParams(
            dimension_semantics=("parallel",),   # shard batch steps across TCs on v7x
        ),
        cost_estimate=cost,
    )(x, w1, b1, w2, b2, w3, b3)

    return out


def init_params(key, layers):
    """Deterministic init mimicking torch.nn.Linear (uniform +- 1/sqrt(fan_in))."""
    params = []
    for i in range(3):
        fan_in, fan_out = layers[i], layers[i + 1]
        key, kw, kb = jax.random.split(key, 3)
        bound = 1.0 / jnp.sqrt(fan_in)
        w = jax.random.uniform(kw, (fan_in, fan_out), jnp.float32, -bound, bound)
        b = jax.random.uniform(kb, (1, fan_out), jnp.float32, -bound, bound)
        params.extend([w, b])
    return tuple(params)


def reference_forward(x, params):
    w1, b1, w2, b2, w3, b3 = params
    h = jnp.maximum(x @ w1 + b1, 0.0)
    h = jnp.maximum(h @ w2 + b2, 0.0)
    return jax.nn.sigmoid(h @ w3 + b3)


# TODO(synk): the module's Adam optimizer / MSELoss are training machinery, not part of the
# forward pass, and are intentionally not translated.

if __name__ == "__main__":
    layers = [32, 64, 64, 16]   # DownstreamFC(layers)

    key = jax.random.PRNGKey(0)
    key, kx1, kx2 = jax.random.split(key, 3)
    params = init_params(key, layers)
    padded_params, d_out = prepare_params(params, matmul_dtype=jnp.bfloat16)

    # Case 1: tiny batch (single exact tile).
    x1 = jax.random.normal(kx1, (8, layers[0]), jnp.float32)
    out1 = jax.block_until_ready(downstream_fc_forward(x1, padded_params, d_out))
    ref1 = reference_forward(x1, params)
    assert out1.shape == (8, layers[3])
    assert jnp.allclose(out1, ref1, atol=3e-2, rtol=0.0), \
        float(jnp.max(jnp.abs(out1 - ref1)))

    # Case 2: ragged batch (multi-step grid with masked edge block).
    x2 = jax.random.normal(kx2, (40, layers[0]), jnp.float32)
    out2 = jax.block_until_ready(downstream_fc_forward(x2, padded_params, d_out))
    ref2 = reference_forward(x2, params)
    assert out2.shape == (40, layers[3])
    assert jnp.allclose(out2, ref2, atol=3e-2, rtol=0.0), \
        float(jnp.max(jnp.abs(out2 - ref2)))

    print("KERNEL_OK")
</pallas_src>

<mosaic_0001>
module attributes {stable_mosaic.version = 11 : i64} {
  func.func @mlp_kernel(%arg0: i32, %arg1: memref<8x32xf32, #tpu.memory_space<vmem>>, %arg2: memref<32x128xbf16, #tpu.memory_space<vmem>>, %arg3: memref<1x128xf32, #tpu.memory_space<vmem>>, %arg4: memref<128x128xbf16, #tpu.memory_space<vmem>>, %arg5: memref<1x128xf32, #tpu.memory_space<vmem>>, %arg6: memref<128x16xbf16, #tpu.memory_space<vmem>>, %arg7: memref<1x16xf32, #tpu.memory_space<vmem>>, %arg8: memref<8x16xf32, #tpu.memory_space<vmem>>) attributes {dimension_semantics = [#tpu.dimension_semantics<parallel>], iteration_bounds = array<i64: 1>, scalar_prefetch = 0 : i64, scratch_operands = 0 : i64, tpu.core_type = #tpu.core_type<tc>, window_params = [{transform_indices = @transform_0, window_bounds = array<i64: 8, 32>}, {pipeline_mode = #tpu.pipeline_mode<synchronous>, transform_indices = @transform_1, window_bounds = array<i64: 32, 128>}, {pipeline_mode = #tpu.pipeline_mode<synchronous>, transform_indices = @transform_2, window_bounds = array<i64: 1, 128>}, {pipeline_mode = #tpu.pipeline_mode<synchronous>, transform_indices = @transform_3, window_bounds = array<i64: 128, 128>}, {pipeline_mode = #tpu.pipeline_mode<synchronous>, transform_indices = @transform_4, window_bounds = array<i64: 1, 128>}, {pipeline_mode = #tpu.pipeline_mode<synchronous>, transform_indices = @transform_5, window_bounds = array<i64: 128, 16>}, {pipeline_mode = #tpu.pipeline_mode<synchronous>, transform_indices = @transform_6, window_bounds = array<i64: 1, 16>}, {transform_indices = @transform_7, window_bounds = array<i64: 8, 16>}]} {
    %c0 = arith.constant 0 : index
    %c0_0 = arith.constant 0 : index
    %0 = vector.load %arg1[%c0, %c0_0] : memref<8x32xf32, #tpu.memory_space<vmem>>, vector<8x32xf32>
    %1 = arith.truncf %0 : vector<8x32xf32> to vector<8x32xbf16>
    %c0_1 = arith.constant 0 : index
    %c0_2 = arith.constant 0 : index
    %2 = vector.load %arg2[%c0_1, %c0_2] : memref<32x128xbf16, #tpu.memory_space<vmem>>, vector<32x128xbf16>
    %cst = arith.constant dense<0.000000e+00> : vector<8x128xf32>
    %3 = tpu.matmul %1, %2, %cst {dimension_numbers = #tpu.dot_dimension_numbers<[1], [0], [0], [1], [0, 0, 1, 1], [], []>} : vector<8x32xbf16>, vector<32x128xbf16>, vector<8x128xf32> -> vector<8x128xf32>
    %c0_3 = arith.constant 0 : index
    %c0_4 = arith.constant 0 : index
    %4 = vector.load %arg3[%c0_3, %c0_4] : memref<1x128xf32, #tpu.memory_space<vmem>>, vector<1x128xf32>
    %5 = vector.broadcast %4 : vector<1x128xf32> to vector<8x128xf32>
    %6 = arith.addf %3, %5 : vector<8x128xf32>
    %cst_5 = arith.constant 0.000000e+00 : f32
    %7 = vector.broadcast %cst_5 : f32 to vector<8x128xf32>
    %8 = arith.maximumf %6, %7 : vector<8x128xf32>
    %9 = arith.truncf %8 : vector<8x128xf32> to vector<8x128xbf16>
    %c0_6 = arith.constant 0 : index
    %c0_7 = arith.constant 0 : index
    %10 = vector.load %arg4[%c0_6, %c0_7] : memref<128x128xbf16, #tpu.memory_space<vmem>>, vector<128x128xbf16>
    %cst_8 = arith.constant dense<0.000000e+00> : vector<8x128xf32>
    %11 = tpu.matmul %9, %10, %cst_8 {dimension_numbers = #tpu.dot_dimension_numbers<[1], [0], [0], [1], [0, 0, 1, 1], [], []>} : vector<8x128xbf16>, vector<128x128xbf16>, vector<8x128xf32> -> vector<8x128xf32>
    %c0_9 = arith.constant 0 : index
    %c0_10 = arith.constant 0 : index
    %12 = vector.load %arg5[%c0_9, %c0_10] : memref<1x128xf32, #tpu.memory_space<vmem>>, vector<1x128xf32>
    %13 = vector.broadcast %12 : vector<1x128xf32> to vector<8x128xf32>
    %14 = arith.addf %11, %13 : vector<8x128xf32>
    %cst_11 = arith.constant 0.000000e+00 : f32
    %15 = vector.broadcast %cst_11 : f32 to vector<8x128xf32>
    %16 = arith.maximumf %14, %15 : vector<8x128xf32>
    %17 = arith.truncf %16 : vector<8x128xf32> to vector<8x128xbf16>
    %c0_12 = arith.constant 0 : index
    %c0_13 = arith.constant 0 : index
    %18 = vector.load %arg6[%c0_12, %c0_13] : memref<128x16xbf16, #tpu.memory_space<vmem>>, vector<128x16xbf16>
    %cst_14 = arith.constant dense<0.000000e+00> : vector<8x16xf32>
    %19 = tpu.matmul %17, %18, %cst_14 {dimension_numbers = #tpu.dot_dimension_numbers<[1], [0], [0], [1], [0, 0, 1, 1], [], []>} : vector<8x128xbf16>, vector<128x16xbf16>, vector<8x16xf32> -> vector<8x16xf32>
    %c0_15 = arith.constant 0 : index
    %c0_16 = arith.constant 0 : index
    %20 = vector.load %arg7[%c0_15, %c0_16] : memref<1x16xf32, #tpu.memory_space<vmem>>, vector<1x16xf32>
    %21 = vector.broadcast %20 : vector<1x16xf32> to vector<8x16xf32>
    %22 = arith.addf %19, %21 : vector<8x16xf32>
    %23 = arith.negf %22 : vector<8x16xf32>
    %24 = math.exp %23 : vector<8x16xf32>
    %cst_17 = arith.constant 1.000000e+00 : f32
    %25 = vector.broadcast %cst_17 : f32 to vector<8x16xf32>
    %26 = arith.addf %25, %24 : vector<8x16xf32>
    %27 = arith.divf %25, %26 : vector<8x16xf32>
    %c0_18 = arith.constant 0 : index
    %c0_19 = arith.constant 0 : index
    %28 = vector.load %arg8[%c0_18, %c0_19] : memref<8x16xf32, #tpu.memory_space<vmem>>, vector<8x16xf32>
    tpu.vector_store %arg8[%c0_18, %c0_19], %27 {strides = array<i32>} : memref<8x16xf32, #tpu.memory_space<vmem>>, vector<8x16xf32>,
    return
  }
  func.func @transform_0(%arg0: i32) -> (i32, i32) {
    %c0_i32 = arith.constant 0 : i32
    %c0_i32_0 = arith.constant 0 : i32
    return %arg0, %c0_i32 : i32, i32
  }
  func.func @transform_1(%arg0: i32) -> (i32, i32) {
    %c0_i32 = arith.constant 0 : i32
    %c0_i32_0 = arith.constant 0 : i32
    %c0_i32_1 = arith.constant 0 : i32
    return %c0_i32, %c0_i32_0 : i32, i32
  }
  func.func @transform_2(%arg0: i32) -> (i32, i32) {
    %c0_i32 = arith.constant 0 : i32
    %c0_i32_0 = arith.constant 0 : i32
    %c0_i32_1 = arith.constant 0 : i32
    return %c0_i32, %c0_i32_0 : i32, i32
  }
  func.func @transform_3(%arg0: i32) -> (i32, i32) {
    %c0_i32 = arith.constant 0 : i32
    %c0_i32_0 = arith.constant 0 : i32
    %c0_i32_1 = arith.constant 0 : i32
    return %c0_i32, %c0_i32_0 : i32, i32
  }
  func.func @transform_4(%arg0: i32) -> (i32, i32) {
    %c0_i32 = arith.constant 0 : i32
    %c0_i32_0 = arith.constant 0 : i32
    %c0_i32_1 = arith.constant 0 : i32
    return %c0_i32, %c0_i32_0 : i32, i32
  }
  func.func @transform_5(%arg0: i32) -> (i32, i32) {
    %c0_i32 = arith.constant 0 : i32
    %c0_i32_0 = arith.constant 0 : i32
    %c0_i32_1 = arith.constant 0 : i32
    return %c0_i32, %c0_i32_0 : i32, i32
  }
  func.func @transform_6(%arg0: i32) -> (i32, i32) {
    %c0_i32 = arith.constant 0 : i32
    %c0_i32_0 = arith.constant 0 : i32
    %c0_i32_1 = arith.constant 0 : i32
    return %c0_i32, %c0_i32_0 : i32, i32
  }
  func.func @transform_7(%arg0: i32) -> (i32, i32) {
    %c0_i32 = arith.constant 0 : i32
    %c0_i32_0 = arith.constant 0 : i32
    return %arg0, %c0_i32 : i32, i32
  }
}

</mosaic_0001>

<llo_original>
// kernel: tpu_custom_call.1
$region0: #{tpu_custom_call.1}
  #allocation0 [shape = 'u32[]', space=smem, size = 0x4, offset = 0x4, fixed_abs, tag = 'smem constant byte address 0x4 - core index']
  #allocation1 [shape = 'u32[72,128]{1,0:T(1,128)}', space=vmem, size = 0x9000, scoped, tag = 'internal scratch']
  %s0 = inlined_call_operand.vmem [shape: f32[8,32], index: 0, kind: input, shape index: {}]
  %s1 = inlined_call_operand.hbm [shape: bf16[32,128], index: 1, kind: input, shape index: {}]
  %s2 = inlined_call_operand.vmem [shape: f32[1,128], index: 2, kind: input, shape index: {}]
  %s3 = inlined_call_operand.vmem [shape: bf16[128,128], index: 3, kind: input, shape index: {}]
  %s4 = inlined_call_operand.vmem [shape: f32[1,128], index: 4, kind: input, shape index: {}]
  %s5 = inlined_call_operand.vmem [shape: bf16[128,16], index: 5, kind: input, shape index: {}]
  %s6 = inlined_call_operand.vmem [shape: f32[1,16], index: 6, kind: input, shape index: {}]
  %s7 = inlined_call_operand.hbm [shape: f32[8,16], index: 7, kind: output, shape index: {}]
  %s8 = sld [smem:[#allocation0]]
  $region42: #{tpu_custom_call.1} parent=0
    _
  %s10 = ssub.s32 1, %s8
  %s11 = scalar_select 0, %s10, %s8
  $region1: #{tpu_custom_call.1} parent=0
    #allocation2 [shape = 'u8[8192]{0}', space=vmem, size = 0x2000, scoped, tag = 'input window, operand 1, single buffered']
    #allocation3 [shape = 's32[1]{0}', space=sflag, size = 0x4, scoped, tag = 'scoped memory for tpu_custom_call.1']
    #allocation4 [shape = 's32[1]{0}', space=sflag, size = 0x4, scoped, tag = 'scoped memory for tpu_custom_call.1']
    #allocation5 [shape = 'u8[4096]{0}', space=vmem, size = 0x1000, scoped, tag = 'output window, operand 0, single buffered']
    %12 = vsyncpa [#allocation3], 0
    %13 = vsyncpa [#allocation4], 0
    // Predicated region
    $region2: #{tpu_custom_call.1} parent=1 // pred_check
      _
    $region3: #{tpu_custom_call.1} parent=1 // pred_check_branch
      %15 = sbr.rel (0) target = $region5
    $region4: #{tpu_custom_call.1} parent=1 // pred_region
      _
    $region5: #{tpu_custom_call.1} parent=1 // pred_fallthru
      _
    // Predicated region
    $region6: #{tpu_custom_call.1} parent=1 // pred_check
      _
    $region7: #{tpu_custom_call.1} parent=1 // pred_check_branch
      %17 = sbr.rel (0) target = $region9
    $region8: #{tpu_custom_call.1} parent=1 // pred_region
      %19 = vsyncadd [#allocation3], 0
      %s20 = sshll.u32 %s1, 4
      %s21 = int_to_ptr.hbm [resolvable:$true] %s20
      %s22 = sshll.u32 [#allocation2], 4
      %s23 = int_to_ptr.vmem [resolvable:$true] %s22
      %28 = dma.hbm_to_vmem [thread:$0]  %s21, 256, %s23, [#allocation3], 64, 64, 4
    $region9: #{tpu_custom_call.1} parent=1 // pred_fallthru
      _
    // Predicated region
    $region10: #{tpu_custom_call.1} parent=1 // pred_check
      _
    $region11: #{tpu_custom_call.1} parent=1 // pred_check_branch
      %30 = sbr.rel (0) target = $region13
    $region12: #{tpu_custom_call.1} parent=1 // pred_region
      _
    $region13: #{tpu_custom_call.1} parent=1 // pred_fallthru
      _
    // Predicated region
    $region14: #{tpu_custom_call.1} parent=1 // pred_check
      _
    $region15: #{tpu_custom_call.1} parent=1 // pred_check_branch
      %32 = sbr.rel (0) target = $region17
    $region16: #{tpu_custom_call.1} parent=1 // pred_region
      _
    $region17: #{tpu_custom_call.1} parent=1 // pred_fallthru
      _
    // Predicated region
    $region18: #{tpu_custom_call.1} parent=1 // pred_check
      _
    $region19: #{tpu_custom_call.1} parent=1 // pred_check_branch
      %34 = sbr.rel (0) target = $region21
    $region20: #{tpu_custom_call.1} parent=1 // pred_region
      _
    $region21: #{tpu_custom_call.1} parent=1 // pred_fallthru
      _
    // Predicated region
    $region22: #{tpu_custom_call.1} parent=1 // pred_check
      _
    $region23: #{tpu_custom_call.1} parent=1 // pred_check_branch
      %36 = sbr.rel (0) target = $region25
    $region24: #{tpu_custom_call.1} parent=1 // pred_region
      _
    $region25: #{tpu_custom_call.1} parent=1 // pred_fallthru
      _
    // Predicated region
    $region26: #{tpu_custom_call.1} parent=1 // pred_check
      _
    $region27: #{tpu_custom_call.1} parent=1 // pred_check_branch
      %38 = sbr.rel (0) target = $region29
    $region28: #{tpu_custom_call.1} parent=1 // pred_region
      _
    $region29: #{tpu_custom_call.1} parent=1 // pred_fallthru
      _
    // Predicated region
    $region30: #{tpu_custom_call.1} parent=1 // pred_check
      _
    $region31: #{tpu_custom_call.1} parent=1 // pred_check_branch
      %40 = sbr.rel (0) target = $region33
    $region32: #{tpu_custom_call.1} parent=1 // pred_region
      %42 = dma.done [#allocation3], 256
    $region33: #{tpu_custom_call.1} parent=1 // pred_fallthru
      _
    %v44 = vld [vmem:[%s0] sm:$0xff]
    %v45 = vpack.c.bf16 %v44, %v44
    %v46 = vld [vmem:[#allocation2] sm:$0xf]
    %v47 = vld [vmem:[#allocation2 + $0x4] sm:$0xf]
    %v48 = vld [vmem:[#allocation2 + $0x8] sm:$0xf]
    %v49 = vld [vmem:[#allocation2 + $0xc] sm:$0xf]
    %v50 = vld [vmem:[%s2] sm:$0x1]
    %v52 = vperm.slane %v50, 0
    %v58 = vunpack.c.l.b16 %v46
    %v59 = vunpack.c.l.b16 %v47
    %v60 = vunpack.c.l.b16 %v48
    %v61 = vunpack.c.l.b16 %v49
    %v62 = vpack.c.b16 %v59, %v58
    %v63 = vpack.c.b16 %v61, %v60
    %vm66 = vcmask 261120
    %v68 = vsel %vm66, %v45, 0
    %70 = vmatpush.bf16.msra.mxu0 0
    %71 = vmatpush.bf16.msra.mxu0 0
    %72 = vmatpush.bf16.msra.mxu0 0
    %73 = vmatpush.bf16.msra.mxu0 0
    %74 = vmatpush.bf16.msra.mxu0 0
    %75 = vmatpush.bf16.msra.mxu0 0
    %76 = vmatpush.bf16.msra.mxu0 %v63
    %77 = vmatpush.bf16.msra.mxu0 %v62
    %78 = vmatmul.bf16.gmra.mxu0 %v68
    %v79 = vpop.f32.mrf.mxu0
    %v80 = vadd.f32 %v52, %v79
    %v81 = vpop.f32.mrf.mxu0
    %82 = vdwg.mxu0
    %v83 = vmax.f32 %v80, 0.0
    %v84 = vpack.c.bf16 %v83, %v83
    %v85 = vld [vmem:[%s3] sm:$0xf]
    %v86 = vld [vmem:[%s3 + $0x4] sm:$0xf]
    %v87 = vld [vmem:[%s3 + $0x8] sm:$0xf]
    %v88 = vld [vmem:[%s3 + $0xc] sm:$0xf]
    %v89 = vld [vmem:[%s3 + $0x10] sm:$0xf]
    %v90 = vld [vmem:[%s3 + $0x14] sm:$0xf]
    %v91 = vld [vmem:[%s3 + $0x18] sm:$0xf]
    %v92 = vld [vmem:[%s3 + $0x1c] sm:$0xf]
    %v93 = vld [vmem:[%s3 + $0x20] sm:$0xf]
    %v94 = vld [vmem:[%s3 + $0x24] sm:$0xf]
    %v95 = vld [vmem:[%s3 + $0x28] sm:$0xf]
    %v96 = vld [vmem:[%s3 + $0x2c] sm:$0xf]
    %v97 = vld [vmem:[%s3 + $0x30] sm:$0xf]
    %v98 = vld [vmem:[%s3 + $0x34] sm:$0xf]
    %v99 = vld [vmem:[%s3 + $0x38] sm:$0xf]
    %v100 = vld [vmem:[%s3 + $0x3c] sm:$0xf]
    %v101 = vld [vmem:[%s4] sm:$0x1]
    %v103 = vperm.slane %v101, 0
    %v121 = vunpack.c.l.b16 %v85
    %v122 = vunpack.c.l.b16 %v86
    %v123 = vunpack.c.l.b16 %v87
    %v124 = vunpack.c.l.b16 %v88
    %v125 = vunpack.c.l.b16 %v89
    %v126 = vunpack.c.l.b16 %v90
    %v127 = vunpack.c.l.b16 %v91
    %v128 = vunpack.c.l.b16 %v92
    %v129 = vunpack.c.l.b16 %v93
    %v130 = vunpack.c.l.b16 %v94
    %v131 = vunpack.c.l.b16 %v95
    %v132 = vunpack.c.l.b16 %v96
    %v133 = vunpack.c.l.b16 %v97
    %v134 = vunpack.c.l.b16 %v98
    %v135 = vunpack.c.l.b16 %v99
    %v136 = vunpack.c.l.b16 %v100
    %v137 = vpack.c.b16 %v122, %v121
    %v138 = vpack.c.b16 %v124, %v123
    %v139 = vpack.c.b16 %v126, %v125
    %v140 = vpack.c.b16 %v128, %v127
    %v141 = vpack.c.b16 %v130, %v129
    %v142 = vpack.c.b16 %v132, %v131
    %v143 = vpack.c.b16 %v134, %v133
    %v144 = vpack.c.b16 %v136, %v135
    %153 = vmatpush.bf16.msra.mxu0 %v144
    %154 = vmatpush.bf16.msra.mxu0 %v143
    %155 = vmatpush.bf16.msra.mxu0 %v142
    %156 = vmatpush.bf16.msra.mxu0 %v141
    %157 = vmatpush.bf16.msra.mxu0 %v140
    %158 = vmatpush.bf16.msra.mxu0 %v139
    %159 = vmatpush.bf16.msra.mxu0 %v138
    %160 = vmatpush.bf16.msra.mxu0 %v137
    %161 = vmatmul.bf16.gmra.mxu0 %v84
    %v162 = vpop.f32.mrf.mxu0
    %v163 = vadd.f32 %v103, %v162
    %v164 = vpop.f32.mrf.mxu0
    %165 = vdwg.mxu0
    %v166 = vmax.f32 %v163, 0.0
    %v167 = vpack.c.bf16 %v166, %v166
    %v168 = vld [vmem:[%s5] sm:$0xf]
    %v169 = vld [vmem:[%s5 + $0x4] sm:$0xf]
    %v170 = vld [vmem:[%s5 + $0x8] sm:$0xf]
    %v171 = vld [vmem:[%s5 + $0xc] sm:$0xf]
    %v172 = vld [vmem:[%s5 + $0x10] sm:$0xf]
    %v173 = vld [vmem:[%s5 + $0x14] sm:$0xf]
    %v174 = vld [vmem:[%s5 + $0x18] sm:$0xf]
    %v175 = vld [vmem:[%s5 + $0x1c] sm:$0xf]
    %v176 = vld [vmem:[%s5 + $0x20] sm:$0xf]
    %v177 = vld [vmem:[%s5 + $0x24] sm:$0xf]
    %v178 = vld [vmem:[%s5 + $0x28] sm:$0xf]
    %v179 = vld [vmem:[%s5 + $0x2c] sm:$0xf]
    %v180 = vld [vmem:[%s5 + $0x30] sm:$0xf]
    %v181 = vld [vmem:[%s5 + $0x34] sm:$0xf]
    %v182 = vld [vmem:[%s5 + $0x38] sm:$0xf]
    %v183 = vld [vmem:[%s5 + $0x3c] sm:$0xf]
    %v184 = vld [vmem:[%s6] sm:$0x1]
    %v186 = vperm.slane %v184, 0
    %v204 = vunpack.c.l.b16 %v168
    %v205 = vunpack.c.l.b16 %v169
    %v206 = vunpack.c.l.b16 %v170
    %v207 = vunpack.c.l.b16 %v171
    %v208 = vunpack.c.l.b16 %v172
    %v209 = vunpack.c.l.b16 %v173
    %v210 = vunpack.c.l.b16 %v174
    %v211 = vunpack.c.l.b16 %v175
    %v212 = vunpack.c.l.b16 %v176
    %v213 = vunpack.c.l.b16 %v177
    %v214 = vunpack.c.l.b16 %v178
    %v215 = vunpack.c.l.b16 %v179
    %v216 = vunpack.c.l.b16 %v180
    %v217 = vunpack.c.l.b16 %v181
    %v218 = vunpack.c.l.b16 %v182
    %v219 = vunpack.c.l.b16 %v183
    %v220 = vpack.c.b16 %v205, %v204
    %v221 = vpack.c.b16 %v207, %v206
    %v222 = vpack.c.b16 %v209, %v208
    %v223 = vpack.c.b16 %v211, %v210
    %v224 = vpack.c.b16 %v213, %v212
    %v225 = vpack.c.b16 %v215, %v214
    %v226 = vpack.c.b16 %v217, %v216
    %v227 = vpack.c.b16 %v219, %v218
    %236 = vmatpush.bf16.msra.mxu0 %v227
    %237 = vmatpush.bf16.msra.mxu0 %v226
    %238 = vmatpush.bf16.msra.mxu0 %v225
    %239 = vmatpush.bf16.msra.mxu0 %v224
    %240 = vmatpush.bf16.msra.mxu0 %v223
    %241 = vmatpush.bf16.msra.mxu0 %v222
    %242 = vmatpush.bf16.msra.mxu0 %v221
    %243 = vmatpush.bf16.msra.mxu0 %v220
    %244 = vmatmul.bf16.gmra.mxu0 %v167
    %v245 = vpop.f32.mrf.mxu0
    %v246 = vadd.f32 %v186, %v245
    %v247 = vpop.f32.mrf.mxu0
    %248 = vdwg.mxu0
    %v249 = vxor.u32 %v246, 2147483648
    %v250 = vmul.f32 %v249, 1.442695
    %v251 = vpow.pop %v250
    %v252 = vadd.f32 %v251, 1.0
    %v253 = vrcp.pop %v252
    %v254 = vmul.f32 %v252, %v253
    %v255 = vsub.f32 1.0, %v254
    %v256 = vmul.f32 %v253, %v255
    %v257 = vadd.f32 %v253, %v256
    %vm258 = vweird.f32 %v252
    %vm259 = vweird.f32 %v253
    %vm260 = vmor %vm258, %vm259
    %v261 = vsel %vm260, %v253, %v257
    %v262 = vand.u32 2147483647, %v252
    %vm263 = vcmp.eq.f32.partialorder %v262, 8.507059e+37
    %v264 = vand.u32 %v252, 2147483648
    %v265 = vor.u32 1.1754944e-38, %v264
    %v266 = vsel %vm263, %v265, %v261
    %v267 = vmul.f32 1.0, %v266
    %vm268 = vcmask 130048
    %269 = vst.msk [vmem:[#allocation5] sm:$0xff] %vm268, %v267
    // Predicated region
    $region34: #{tpu_custom_call.1} parent=1 // pred_check
      _
    $region35: #{tpu_custom_call.1} parent=1 // pred_check_branch
      %271 = sbr.rel (0) target = $region37
    $region36: #{tpu_custom_call.1} parent=1 // pred_region
      %273 = vsyncadd [#allocation4], 0
      %s275 = sshll.u32 [#allocation5], 4
      %s276 = int_to_ptr.vmem [resolvable:$true] %s275
      %s277 = sshll.u32 %s7, 4
      %s278 = int_to_ptr.hbm [resolvable:$true] %s277
      %280 = dma.vmem_to_hbm [thread:$0]  %s276, 128, %s278, [#allocation4]
    $region37: #{tpu_custom_call.1} parent=1 // pred_fallthru
      _
    // Predicated region
    $region38: #{tpu_custom_call.1} parent=1 // pred_check
      _
    $region39: #{tpu_custom_call.1} parent=1 // pred_check_branch
      %282 = sbr.rel (0) target = $region41
    $region40: #{tpu_custom_call.1} parent=1 // pred_region
      %284 = dma.done [#allocation4], 128
    $region41: #{tpu_custom_call.1} parent=1 // pred_fallthru
      _
    %285 = vsyncpa [#allocation3], 1
    %286 = vsyncpa [#allocation4], 1

</llo_original>
